<compile_context>
chip_gen: v6e
topology: v6e:2x2x1
jax: 0.10.0
libtpu: 0.0.40
codegen_flags: <defaults>
</compile_context>

<pallas_src>
import functools

import jax
import jax.numpy as jnp
from jax.experimental import pallas as pl
from jax.experimental.pallas import tpu as pltpu


# --------------------------------------------------------------------------- #
# Kernel
# --------------------------------------------------------------------------- #
def _gat_attention_kernel(adj_ref, sdst_ref, ssrc_ref, z_ref, o_ref, *,
                          num_heads, dim_out, neg_slope, compute_dtype):
    """One dst tile of multi-head GAT attention (transposed layout).

    adj_ref  : (N, TILE)     int8   adj_t[src, dst] != 0 iff edge src->dst
    sdst_ref : (H, TILE)     f32    a_dst . z[dst] per head, this dst tile
    ssrc_ref : (N, H)        f32    a_src . z[src] per head (grid-invariant)
    z_ref    : (H, D, N)     bf16   per-head projected features (grid-invariant)
    o_ref    : (H*D, TILE)          transposed output tile
    """
    neg = jnp.asarray(-1e30, dtype=compute_dtype)
    slope = jnp.asarray(neg_slope, dtype=compute_dtype)

    # Shared across heads; no (TILE, N) f32 bias tensor is materialized.
    mask = adj_ref[...] != 0                               # (N, TILE)
    ssrc = ssrc_ref[...].astype(compute_dtype)             # (N, H)
    sdst = sdst_ref[...].astype(compute_dtype)             # (H, TILE)

    for hd in range(num_heads):
        # e_t[u, v] = leaky_relu(a_src.z[u] + a_dst.z[v]) for edges u->v
        scores = ssrc[:, hd:hd + 1] + sdst[hd:hd + 1, :]   # (N, TILE)
        lrelu = jnp.maximum(scores, slope * scores)        # maximum-form leaky_relu
        e = jnp.where(mask, lrelu, neg)                    # mask folded into select
        m = jnp.max(e, axis=0, keepdims=True)              # (1, TILE)  (max is exact)
        p = jnp.exp(e - m)                                 # (N, TILE)  compute_dtype
        # Softmax sum / reciprocal kept in f32 (review correctness note).
        denom = jnp.sum(p.astype(jnp.float32), axis=0, keepdims=True)   # (1, TILE)
        inv = pl.reciprocal(denom, approx=True)            # EUP slot (~free)

        # MXU pass with a lane-dense (TILE-wide) output: (D, N) @ (N, TILE).
        agg = jnp.dot(z_ref[hd], p.astype(jnp.bfloat16),
                      preferred_element_type=jnp.float32)  # (D, TILE) f32
        # Normalize post-matmul on the tiny (D, TILE) result and store this head
        # immediately — no per-head partials kept alive, no concatenate.
        o_ref[hd * dim_out:(hd + 1) * dim_out, :] = (agg * inv).astype(o_ref.dtype)


# --------------------------------------------------------------------------- #
# Wrapper helpers
# --------------------------------------------------------------------------- #
def _block_spec(shape, index_map, *, buffer_count=None):
    """BlockSpec, optionally requesting a specific pipeline buffer depth.

    Grid-invariant blocks are requested with buffer_count=1 (single-buffered).
    Falls back to a plain BlockSpec if this JAX build's BlockSpec does not take
    `pipeline_mode` (keeps the kernel runnable everywhere)."""
    if buffer_count is not None and hasattr(pl, "Buffered"):
        try:
            return pl.BlockSpec(shape, index_map,
                                pipeline_mode=pl.Buffered(buffer_count))
        except TypeError:
            pass
    return pl.BlockSpec(shape, index_map)


def _chip_defaults():
    """Best-effort chip query: (physical VMEM bytes, bf16 VPU/EUP available)."""
    vmem_bytes = 64 * 1024 * 1024        # conservative default (v7x: 64 MiB / TC)
    bf16_fast = True                     # v6e / v7x have bf16 VPU & EUP
    try:
        if hasattr(pltpu, "get_tpu_info"):
            info = pltpu.get_tpu_info()
            vmem_bytes = int(getattr(info, "vmem_capacity_bytes", vmem_bytes))
            name = str(getattr(info, "chip_version", "")).lower()
            # v5e and older: no bf16 VPU/EUP -> keep the softmax path in f32.
            if any(tag in name for tag in ("v2", "v3", "v4", "v5")):
                bf16_fast = False
    except Exception:                    # detection is best-effort only
        pass
    return vmem_bytes, bf16_fast


def _pick_tile_dst(N, num_heads, dim_out, vmem_bytes, compute_itemsize,
                   out_itemsize):
    """Largest lane-aligned dst tile whose resident set fits the VMEM budget."""
    budget = int(vmem_bytes * 0.7)                       # headroom for compiler scratch
    fixed = (num_heads * dim_out * N * 2                 # z_heads bf16 (single-buffered)
             + N * 128 * 4)                              # ssrc (N, H): lane-padded to 128
    per_col = (2 * N                                     # adj_t int8 (double-buffered)
               + 2 * 8 * 4                               # sdst rows (sublane-padded)
               + 2 * num_heads * dim_out * out_itemsize  # output block (double-buffered)
               + N * (1 + 3 * compute_itemsize))         # mask + ~3 live (N, TILE) temps
    tile = (budget - fixed) // max(per_col, 1)
    tile = (tile // 128) * 128
    return int(min(512, max(128, tile)))


# --------------------------------------------------------------------------- #
# Public entry point
# --------------------------------------------------------------------------- #
def multi_head_gat_layer(h, adj, W, A, *, neg_slope=0.01, tile_dst=None,
                         compute_dtype=None):
    """Pallas implementation of MultiHeadGATLayer.forward with merge='cat'.

    h   : (N, dim_in) node features
    adj : (N, N), adj[dst, src] != 0 iff edge src->dst (self-loops expected)
    W   : (num_heads, dim_out, dim_in)
    A   : (num_heads, 2*dim_out)
    returns (N, num_heads * dim_out)
    """
    N, dim_in = h.shape
    num_heads, dim_out, _ = W.shape
    out_dtype = h.dtype
    out_itemsize = jnp.dtype(out_dtype).itemsize

    vmem_bytes, bf16_fast = _chip_defaults()
    if compute_dtype is None:
        compute_dtype = jnp.bfloat16 if bf16_fast else jnp.float32
    compute_itemsize = jnp.dtype(compute_dtype).itemsize

    # --- head-fused projections: lane-filling matmuls done once in XLA ---------
    W_all = W.reshape(num_heads * dim_out, dim_in).astype(jnp.float32)
    z_flat = jnp.dot(h.astype(jnp.float32), W_all.T,
                     preferred_element_type=jnp.float32)            # (N, H*D)
    z_nhd = z_flat.reshape(N, num_heads, dim_out)
    a_src = A[:, :dim_out].astype(jnp.float32)                      # (H, D)
    a_dst = A[:, dim_out:].astype(jnp.float32)                      # (H, D)
    s_src = jnp.einsum('nhd,hd->nh', z_nhd, a_src)                  # (N, H)
    sdst_t = jnp.einsum('nhd,hd->hn', z_nhd, a_dst)                 # (H, N)
    # z laid out (H, D, N): the MXU output axis becomes the dst tile (lane-dense).
    z_heads = jnp.transpose(z_nhd, (1, 2, 0)).astype(jnp.bfloat16)  # (H, D, N)
    # Adjacency transposed to (src, dst) so the kernel's lane axis is the dst tile.
    adj_t = (adj != 0).astype(jnp.int8).T                           # (N, N)

    # --- per-generation tiling (v7x has half the VMEM of v5e/v6e) --------------
    if tile_dst is None:
        tile_dst = _pick_tile_dst(N, num_heads, dim_out, vmem_bytes,
                                  compute_itemsize, out_itemsize)
    if tile_dst >= N:
        tile_dst = N
    else:
        tile_dst = max(128, (tile_dst // 128) * 128)   # lane-aligned block shapes
        if tile_dst >= N:
            tile_dst = N
    grid = (pl.cdiv(N, tile_dst),)

    kernel = functools.partial(_gat_attention_kernel, num_heads=num_heads,
                               dim_out=dim_out, neg_slope=neg_slope,
                               compute_dtype=compute_dtype)

    cost = pl.CostEstimate(
        flops=2 * num_heads * N * N * dim_out,
        transcendentals=num_heads * N * N,
        bytes_accessed=(N * N                                   # adj int8
                        + num_heads * dim_out * N * 2           # z bf16
                        + 2 * N * num_heads * 4                 # s_src / s_dst
                        + num_heads * dim_out * N * out_itemsize),
    )
    compiler_params = pltpu.CompilerParams(
        dimension_semantics=("parallel",),                      # dst tiles -> megacore
        vmem_limit_bytes=int(vmem_bytes) * 3 // 4,              # ~96 MiB v5e/v6e, ~48 MiB v7x
    )

    def build(single_buffer_constants):
        const = functools.partial(
            _block_spec, buffer_count=1 if single_buffer_constants else None)
        return pl.pallas_call(
            kernel,
            out_shape=jax.ShapeDtypeStruct((num_heads * dim_out, N), out_dtype),
            grid_spec=pltpu.PrefetchScalarGridSpec(
                num_scalar_prefetch=0,
                grid=grid,
                in_specs=[
                    # adjacency columns for this dst tile (streamed, double-buffered)
                    pl.BlockSpec((N, tile_dst), lambda d: (0, d)),
                    # per-head dst scores for this dst tile
                    pl.BlockSpec((num_heads, tile_dst), lambda d: (0, d)),
                    # grid-invariant: per-head src scores (DMA'd once, single buffer)
                    const((N, num_heads), lambda d: (0, 0)),
                    # grid-invariant: per-head projected features (single buffer)
                    const((num_heads, dim_out, N), lambda d: (0, 0, 0)),
                ],
                out_specs=pl.BlockSpec((num_heads * dim_out, tile_dst),
                                       lambda d: (0, d)),
            ),
            compiler_params=compiler_params,
            cost_estimate=cost,
        )

    args = (adj_t, sdst_t, s_src, z_heads)
    try:
        out_t = build(True)(*args)
    except Exception:
        # pl.Buffered(1) unsupported in this JAX build -> default double-buffering.
        out_t = build(False)(*args)

    # TODO(synk): for graphs with N beyond a few thousand nodes, add an inner
    # "arbitrary" src-tile grid axis with a flash-style online softmax so VMEM
    # stays O(TILE_DST * TILE_SRC) instead of O(N) per step.
    return out_t.T                                   # (N, num_heads * dim_out)


# --------------------------------------------------------------------------- #
# Reference + self-test
# --------------------------------------------------------------------------- #
def _reference(h, adj, W, A, neg_slope=0.01):
    """Pure-JAX reference matching the PyTorch/DGL semantics (merge='cat')."""
    adj_f = (adj != 0).astype(jnp.float32)
    outs = []
    for hd in range(W.shape[0]):
        z = h @ W[hd].T                              # (N, dim_out)
        dim_out = z.shape[1]
        a_src, a_dst = A[hd, :dim_out], A[hd, dim_out:]
        s_src, s_dst = z @ a_src, z @ a_dst          # (N,), (N,)
        scores = s_dst[:, None] + s_src[None, :]     # (N_dst, N_src)
        e = jnp.where(scores > 0, scores, neg_slope * scores)
        e = jnp.where(adj_f > 0.5, e, -1e30)
        alpha = jax.nn.softmax(e, axis=1)
        outs.append(alpha @ z)
    return jnp.concatenate(outs, axis=1)


def _make_graph(key, n):
    """Random directed graph + self-loops (so every node has in-degree >= 1)."""
    adj = (jax.random.uniform(key, (n, n)) < 0.3).astype(jnp.int8)
    return jnp.maximum(adj, jnp.eye(n, dtype=jnp.int8))


if __name__ == "__main__":
    key = jax.random.PRNGKey(0)
    keys = jax.random.split(key, 12)

    def run_case(kh, kadj, kw, ka, *, N, dim_in, dim_out, num_heads,
                 tile_dst=None):
        h = jax.random.normal(kh, (N, dim_in), dtype=jnp.float32)
        adj = _make_graph(kadj, N)
        W = jax.random.normal(kw, (num_heads, dim_out, dim_in),
                              dtype=jnp.float32) * 0.1
        A = jax.random.normal(ka, (num_heads, 2 * dim_out),
                              dtype=jnp.float32) * 0.1
        out = jax.block_until_ready(
            multi_head_gat_layer(h, adj, W, A, tile_dst=tile_dst))
        ref = _reference(h, adj, W, A)
        assert out.shape == (N, num_heads * dim_out)
        # bf16 softmax path + bf16 MXU inputs + approx reciprocal -> loose tolerance
        assert jnp.allclose(out, ref, atol=3e-2, rtol=3e-2), \
            f"mismatch vs reference (N={N}, heads={num_heads})"

    # 1) small graph, single dst tile
    run_case(keys[0], keys[1], keys[2], keys[3],
             N=16, dim_in=8, dim_out=8, num_heads=4)
    # 2) aligned multi-tile dst grid (2 x 128)
    run_case(keys[4], keys[5], keys[6], keys[7],
             N=256, dim_in=16, dim_out=8, num_heads=3, tile_dst=128)
    # 3) ragged last dst tile (N not a multiple of the tile; padded cols discarded)
    run_case(keys[8], keys[9], keys[10], keys[11],
             N=160, dim_in=12, dim_out=16, num_heads=2, tile_dst=128)

    print("KERNEL_OK")
</pallas_src>

<mosaic_0001>
module attributes {stable_mosaic.version = 11 : i64} {
  func.func @_gat_attention_kernel(%arg0: i32, %arg1: memref<16x16xi8, #tpu.memory_space<vmem>>, %arg2: memref<4x16xf32, #tpu.memory_space<vmem>>, %arg3: memref<16x4xf32, #tpu.memory_space<vmem>>, %arg4: memref<4x8x16xbf16, #tpu.memory_space<vmem>>, %arg5: memref<32x16xf32, #tpu.memory_space<vmem>>) attributes {dimension_semantics = [#tpu.dimension_semantics<parallel>], iteration_bounds = array<i64: 1>, scalar_prefetch = 0 : i64, scratch_operands = 0 : i64, tpu.core_type = #tpu.core_type<tc>, window_params = [{transform_indices = @transform_0, window_bounds = array<i64: 16, 16>}, {transform_indices = @transform_1, window_bounds = array<i64: 4, 16>}, {pipeline_mode = #tpu.pipeline_mode<synchronous>, transform_indices = @transform_2, window_bounds = array<i64: 16, 4>}, {pipeline_mode = #tpu.pipeline_mode<synchronous>, transform_indices = @transform_3, window_bounds = array<i64: 4, 8, 16>}, {transform_indices = @transform_4, window_bounds = array<i64: 32, 16>}]} {
    %c0 = arith.constant 0 : index
    %c0_0 = arith.constant 0 : index
    %0 = vector.load %arg1[%c0, %c0_0] : memref<16x16xi8, #tpu.memory_space<vmem>>, vector<16x16xi8>
    %c0_i8 = arith.constant 0 : i8
    %1 = vector.broadcast %c0_i8 : i8 to vector<16x16xi8>
    %2 = arith.cmpi ne, %0, %1 : vector<16x16xi8>
    %c0_1 = arith.constant 0 : index
    %c0_2 = arith.constant 0 : index
    %3 = vector.load %arg3[%c0_1, %c0_2] : memref<16x4xf32, #tpu.memory_space<vmem>>, vector<16x4xf32>
    %4 = arith.truncf %3 : vector<16x4xf32> to vector<16x4xbf16>
    %c0_3 = arith.constant 0 : index
    %c0_4 = arith.constant 0 : index
    %5 = vector.load %arg2[%c0_3, %c0_4] : memref<4x16xf32, #tpu.memory_space<vmem>>, vector<4x16xf32>
    %6 = arith.truncf %5 : vector<4x16xf32> to vector<4x16xbf16>
    %7 = vector.extract_strided_slice %4 {offsets = [0, 0], sizes = [16, 1], strides = [1, 1]} : vector<16x4xbf16> to vector<16x1xbf16>
    %8 = vector.extract_strided_slice %6 {offsets = [0, 0], sizes = [1, 16], strides = [1, 1]} : vector<4x16xbf16> to vector<1x16xbf16>
    %9 = vector.broadcast %7 : vector<16x1xbf16> to vector<16x16xbf16>
    %10 = vector.broadcast %8 : vector<1x16xbf16> to vector<16x16xbf16>
    %11 = arith.addf %9, %10 : vector<16x16xbf16>
    %cst = arith.constant 1.000980e-02 : bf16
    %12 = vector.broadcast %cst : bf16 to vector<16x16xbf16>
    %13 = arith.mulf %12, %11 : vector<16x16xbf16>
    %14 = arith.maximumf %11, %13 : vector<16x16xbf16>
    %cst_5 = arith.constant -1.000260e+30 : bf16
    %15 = vector.broadcast %cst_5 : bf16 to vector<16x16xbf16>
    %16 = arith.select %2, %14, %15 : vector<16x16xi1>, vector<16x16xbf16>
    %cst_6 = arith.constant dense<0xFF80> : vector<16xbf16>
    %17 = vector.multi_reduction <maximumf>, %16, %cst_6 [0] : vector<16x16xbf16> to vector<16xbf16>
    %18 = vector.shape_cast %17 : vector<16xbf16> to vector<1x16xbf16>
    %19 = vector.broadcast %18 : vector<1x16xbf16> to vector<16x16xbf16>
    %20 = arith.subf %16, %19 : vector<16x16xbf16>
    %21 = math.exp %20 : vector<16x16xbf16>
    %22 = arith.extf %21 : vector<16x16xbf16> to vector<16x16xf32>
    %cst_7 = arith.constant dense<0.000000e+00> : vector<16xf32>
    %23 = vector.multi_reduction <add>, %22, %cst_7 [0] : vector<16x16xf32> to vector<16xf32>
    %24 = vector.shape_cast %23 : vector<16xf32> to vector<1x16xf32>
    %25 = tpu.reciprocal %24 {approx = true} : vector<1x16xf32> -> vector<1x16xf32>
    %c0_8 = arith.constant 0 : index
    %c0_9 = arith.constant 0 : index
    %c0_10 = arith.constant 0 : index
    %26 = vector.load %arg4[%c0_8, %c0_9, %c0_10] : memref<4x8x16xbf16, #tpu.memory_space<vmem>>, vector<1x8x16xbf16>
    %27 = vector.shape_cast %26 : vector<1x8x16xbf16> to vector<8x16xbf16>
    %cst_11 = arith.constant dense<0.000000e+00> : vector<8x16xf32>
    %28 = tpu.matmul %27, %21, %cst_11 {dimension_numbers = #tpu.dot_dimension_numbers<[1], [0], [0], [1], [0, 0, 1, 1], [], []>} : vector<8x16xbf16>, vector<16x16xbf16>, vector<8x16xf32> -> vector<8x16xf32>
    %29 = vector.broadcast %25 : vector<1x16xf32> to vector<8x16xf32>
    %30 = arith.mulf %28, %29 : vector<8x16xf32>
    %c0_12 = arith.constant 0 : index
    %c0_13 = arith.constant 0 : index
    %31 = vector.load %arg5[%c0_12, %c0_13] : memref<32x16xf32, #tpu.memory_space<vmem>>, vector<8x16xf32>
    tpu.vector_store %arg5[%c0_12, %c0_13], %30 {strides = array<i32>} : memref<32x16xf32, #tpu.memory_space<vmem>>, vector<8x16xf32>,
    %32 = vector.extract_strided_slice %4 {offsets = [0, 1], sizes = [16, 1], strides = [1, 1]} : vector<16x4xbf16> to vector<16x1xbf16>
    %33 = vector.extract_strided_slice %6 {offsets = [1, 0], sizes = [1, 16], strides = [1, 1]} : vector<4x16xbf16> to vector<1x16xbf16>
    %34 = vector.broadcast %32 : vector<16x1xbf16> to vector<16x16xbf16>
    %35 = vector.broadcast %33 : vector<1x16xbf16> to vector<16x16xbf16>
    %36 = arith.addf %34, %35 : vector<16x16xbf16>
    %cst_14 = arith.constant 1.000980e-02 : bf16
    %37 = vector.broadcast %cst_14 : bf16 to vector<16x16xbf16>
    %38 = arith.mulf %37, %36 : vector<16x16xbf16>
    %39 = arith.maximumf %36, %38 : vector<16x16xbf16>
    %cst_15 = arith.constant -1.000260e+30 : bf16
    %40 = vector.broadcast %cst_15 : bf16 to vector<16x16xbf16>
    %41 = arith.select %2, %39, %40 : vector<16x16xi1>, vector<16x16xbf16>
    %cst_16 = arith.constant dense<0xFF80> : vector<16xbf16>
    %42 = vector.multi_reduction <maximumf>, %41, %cst_16 [0] : vector<16x16xbf16> to vector<16xbf16>
    %43 = vector.shape_cast %42 : vector<16xbf16> to vector<1x16xbf16>
    %44 = vector.broadcast %43 : vector<1x16xbf16> to vector<16x16xbf16>
    %45 = arith.subf %41, %44 : vector<16x16xbf16>
    %46 = math.exp %45 : vector<16x16xbf16>
    %47 = arith.extf %46 : vector<16x16xbf16> to vector<16x16xf32>
    %cst_17 = arith.constant dense<0.000000e+00> : vector<16xf32>
    %48 = vector.multi_reduction <add>, %47, %cst_17 [0] : vector<16x16xf32> to vector<16xf32>
    %49 = vector.shape_cast %48 : vector<16xf32> to vector<1x16xf32>
    %50 = tpu.reciprocal %49 {approx = true} : vector<1x16xf32> -> vector<1x16xf32>
    %c1 = arith.constant 1 : index
    %c0_18 = arith.constant 0 : index
    %c0_19 = arith.constant 0 : index
    %51 = vector.load %arg4[%c1, %c0_18, %c0_19] : memref<4x8x16xbf16, #tpu.memory_space<vmem>>, vector<1x8x16xbf16>
    %52 = vector.shape_cast %51 : vector<1x8x16xbf16> to vector<8x16xbf16>
    %cst_20 = arith.constant dense<0.000000e+00> : vector<8x16xf32>
    %53 = tpu.matmul %52, %46, %cst_20 {dimension_numbers = #tpu.dot_dimension_numbers<[1], [0], [0], [1], [0, 0, 1, 1], [], []>} : vector<8x16xbf16>, vector<16x16xbf16>, vector<8x16xf32> -> vector<8x16xf32>
    %54 = vector.broadcast %50 : vector<1x16xf32> to vector<8x16xf32>
    %55 = arith.mulf %53, %54 : vector<8x16xf32>
    %c8 = arith.constant 8 : index
    %c0_21 = arith.constant 0 : index
    %56 = vector.load %arg5[%c8, %c0_21] : memref<32x16xf32, #tpu.memory_space<vmem>>, vector<8x16xf32>
    tpu.vector_store %arg5[%c8, %c0_21], %55 {strides = array<i32>} : memref<32x16xf32, #tpu.memory_space<vmem>>, vector<8x16xf32>,
    %57 = vector.extract_strided_slice %4 {offsets = [0, 2], sizes = [16, 1], strides = [1, 1]} : vector<16x4xbf16> to vector<16x1xbf16>
    %58 = vector.extract_strided_slice %6 {offsets = [2, 0], sizes = [1, 16], strides = [1, 1]} : vector<4x16xbf16> to vector<1x16xbf16>
    %59 = vector.broadcast %57 : vector<16x1xbf16> to vector<16x16xbf16>
    %60 = vector.broadcast %58 : vector<1x16xbf16> to vector<16x16xbf16>
    %61 = arith.addf %59, %60 : vector<16x16xbf16>
    %cst_22 = arith.constant 1.000980e-02 : bf16
    %62 = vector.broadcast %cst_22 : bf16 to vector<16x16xbf16>
    %63 = arith.mulf %62, %61 : vector<16x16xbf16>
    %64 = arith.maximumf %61, %63 : vector<16x16xbf16>
    %cst_23 = arith.constant -1.000260e+30 : bf16
    %65 = vector.broadcast %cst_23 : bf16 to vector<16x16xbf16>
    %66 = arith.select %2, %64, %65 : vector<16x16xi1>, vector<16x16xbf16>
    %cst_24 = arith.constant dense<0xFF80> : vector<16xbf16>
    %67 = vector.multi_reduction <maximumf>, %66, %cst_24 [0] : vector<16x16xbf16> to vector<16xbf16>
    %68 = vector.shape_cast %67 : vector<16xbf16> to vector<1x16xbf16>
    %69 = vector.broadcast %68 : vector<1x16xbf16> to vector<16x16xbf16>
    %70 = arith.subf %66, %69 : vector<16x16xbf16>
    %71 = math.exp %70 : vector<16x16xbf16>
    %72 = arith.extf %71 : vector<16x16xbf16> to vector<16x16xf32>
    %cst_25 = arith.constant dense<0.000000e+00> : vector<16xf32>
    %73 = vector.multi_reduction <add>, %72, %cst_25 [0] : vector<16x16xf32> to vector<16xf32>
    %74 = vector.shape_cast %73 : vector<16xf32> to vector<1x16xf32>
    %75 = tpu.reciprocal %74 {approx = true} : vector<1x16xf32> -> vector<1x16xf32>
    %c2 = arith.constant 2 : index
    %c0_26 = arith.constant 0 : index
    %c0_27 = arith.constant 0 : index
    %76 = vector.load %arg4[%c2, %c0_26, %c0_27] : memref<4x8x16xbf16, #tpu.memory_space<vmem>>, vector<1x8x16xbf16>
    %77 = vector.shape_cast %76 : vector<1x8x16xbf16> to vector<8x16xbf16>
    %cst_28 = arith.constant dense<0.000000e+00> : vector<8x16xf32>
    %78 = tpu.matmul %77, %71, %cst_28 {dimension_numbers = #tpu.dot_dimension_numbers<[1], [0], [0], [1], [0, 0, 1, 1], [], []>} : vector<8x16xbf16>, vector<16x16xbf16>, vector<8x16xf32> -> vector<8x16xf32>
    %79 = vector.broadcast %75 : vector<1x16xf32> to vector<8x16xf32>
    %80 = arith.mulf %78, %79 : vector<8x16xf32>
    %c16 = arith.constant 16 : index
    %c0_29 = arith.constant 0 : index
    %81 = vector.load %arg5[%c16, %c0_29] : memref<32x16xf32, #tpu.memory_space<vmem>>, vector<8x16xf32>
    tpu.vector_store %arg5[%c16, %c0_29], %80 {strides = array<i32>} : memref<32x16xf32, #tpu.memory_space<vmem>>, vector<8x16xf32>,
    %82 = vector.extract_strided_slice %4 {offsets = [0, 3], sizes = [16, 1], strides = [1, 1]} : vector<16x4xbf16> to vector<16x1xbf16>
    %83 = vector.extract_strided_slice %6 {offsets = [3, 0], sizes = [1, 16], strides = [1, 1]} : vector<4x16xbf16> to vector<1x16xbf16>
    %84 = vector.broadcast %82 : vector<16x1xbf16> to vector<16x16xbf16>
    %85 = vector.broadcast %83 : vector<1x16xbf16> to vector<16x16xbf16>
    %86 = arith.addf %84, %85 : vector<16x16xbf16>
    %cst_30 = arith.constant 1.000980e-02 : bf16
    %87 = vector.broadcast %cst_30 : bf16 to vector<16x16xbf16>
    %88 = arith.mulf %87, %86 : vector<16x16xbf16>
    %89 = arith.maximumf %86, %88 : vector<16x16xbf16>
    %cst_31 = arith.constant -1.000260e+30 : bf16
    %90 = vector.broadcast %cst_31 : bf16 to vector<16x16xbf16>
    %91 = arith.select %2, %89, %90 : vector<16x16xi1>, vector<16x16xbf16>
    %cst_32 = arith.constant dense<0xFF80> : vector<16xbf16>
    %92 = vector.multi_reduction <maximumf>, %91, %cst_32 [0] : vector<16x16xbf16> to vector<16xbf16>
    %93 = vector.shape_cast %92 : vector<16xbf16> to vector<1x16xbf16>
    %94 = vector.broadcast %93 : vector<1x16xbf16> to vector<16x16xbf16>
    %95 = arith.subf %91, %94 : vector<16x16xbf16>
    %96 = math.exp %95 : vector<16x16xbf16>
    %97 = arith.extf %96 : vector<16x16xbf16> to vector<16x16xf32>
    %cst_33 = arith.constant dense<0.000000e+00> : vector<16xf32>
    %98 = vector.multi_reduction <add>, %97, %cst_33 [0] : vector<16x16xf32> to vector<16xf32>
    %99 = vector.shape_cast %98 : vector<16xf32> to vector<1x16xf32>
    %100 = tpu.reciprocal %99 {approx = true} : vector<1x16xf32> -> vector<1x16xf32>
    %c3 = arith.constant 3 : index
    %c0_34 = arith.constant 0 : index
    %c0_35 = arith.constant 0 : index
    %101 = vector.load %arg4[%c3, %c0_34, %c0_35] : memref<4x8x16xbf16, #tpu.memory_space<vmem>>, vector<1x8x16xbf16>
    %102 = vector.shape_cast %101 : vector<1x8x16xbf16> to vector<8x16xbf16>
    %cst_36 = arith.constant dense<0.000000e+00> : vector<8x16xf32>
    %103 = tpu.matmul %102, %96, %cst_36 {dimension_numbers = #tpu.dot_dimension_numbers<[1], [0], [0], [1], [0, 0, 1, 1], [], []>} : vector<8x16xbf16>, vector<16x16xbf16>, vector<8x16xf32> -> vector<8x16xf32>
    %104 = vector.broadcast %100 : vector<1x16xf32> to vector<8x16xf32>
    %105 = arith.mulf %103, %104 : vector<8x16xf32>
    %c24 = arith.constant 24 : index
    %c0_37 = arith.constant 0 : index
    %106 = vector.load %arg5[%c24, %c0_37] : memref<32x16xf32, #tpu.memory_space<vmem>>, vector<8x16xf32>
    tpu.vector_store %arg5[%c24, %c0_37], %105 {strides = array<i32>} : memref<32x16xf32, #tpu.memory_space<vmem>>, vector<8x16xf32>,
    return
  }
  func.func @transform_0(%arg0: i32) -> (i32, i32) {
    %c0_i32 = arith.constant 0 : i32
    %c0_i32_0 = arith.constant 0 : i32
    return %c0_i32, %arg0 : i32, i32
  }
  func.func @transform_1(%arg0: i32) -> (i32, i32) {
    %c0_i32 = arith.constant 0 : i32
    %c0_i32_0 = arith.constant 0 : i32
    return %c0_i32, %arg0 : i32, i32
  }
  func.func @transform_2(%arg0: i32) -> (i32, i32) {
    %c0_i32 = arith.constant 0 : i32
    %c0_i32_0 = arith.constant 0 : i32
    %c0_i32_1 = arith.constant 0 : i32
    return %c0_i32, %c0_i32_0 : i32, i32
  }
  func.func @transform_3(%arg0: i32) -> (i32, i32, i32) {
    %c0_i32 = arith.constant 0 : i32
    %c0_i32_0 = arith.constant 0 : i32
    %c0_i32_1 = arith.constant 0 : i32
    %c0_i32_2 = arith.constant 0 : i32
    return %c0_i32, %c0_i32_0, %c0_i32_1 : i32, i32, i32
  }
  func.func @transform_4(%arg0: i32) -> (i32, i32) {
    %c0_i32 = arith.constant 0 : i32
    %c0_i32_0 = arith.constant 0 : i32
    return %c0_i32, %arg0 : i32, i32
  }
}

module attributes {stable_mosaic.version = 11 : i64} {
  func.func @_gat_attention_kernel(%arg0: i32, %arg1: memref<16x16xi8, #tpu.memory_space<vmem>>, %arg2: memref<4x16xf32, #tpu.memory_space<vmem>>, %arg3: memref<16x4xf32, #tpu.memory_space<vmem>>, %arg4: memref<4x8x16xbf16, #tpu.memory_space<vmem>>, %arg5: memref<32x16xf32, #tpu.memory_space<vmem>>) attributes {dimension_semantics = [#tpu.dimension_semantics<parallel>], iteration_bounds = array<i64: 1>, scalar_prefetch = 0 : i64, scratch_operands = 0 : i64, tpu.core_type = #tpu.core_type<tc>, window_params = [{transform_indices = @transform_0, window_bounds = array<i64: 16, 16>}, {transform_indices = @transform_1, window_bounds = array<i64: 4, 16>}, {pipeline_mode = #tpu.pipeline_mode<synchronous>, transform_indices = @transform_2, window_bounds = array<i64: 16, 4>}, {pipeline_mode = #tpu.pipeline_mode<synchronous>, transform_indices = @transform_3, window_bounds = array<i64: 4, 8, 16>}, {transform_indices = @transform_4, window_bounds = array<i64: 32, 16>}]} {
    %c0 = arith.constant 0 : index
    %c0_0 = arith.constant 0 : index
    %0 = vector.load %arg1[%c0, %c0_0] : memref<16x16xi8, #tpu.memory_space<vmem>>, vector<16x16xi8>
    %c0_i8 = arith.constant 0 : i8
    %1 = vector.broadcast %c0_i8 : i8 to vector<16x16xi8>
    %2 = arith.cmpi ne, %0, %1 : vector<16x16xi8>
    %c0_1 = arith.constant 0 : index
    %c0_2 = arith.constant 0 : index
    %3 = vector.load %arg3[%c0_1, %c0_2] : memref<16x4xf32, #tpu.memory_space<vmem>>, vector<16x4xf32>
    %4 = arith.truncf %3 : vector<16x4xf32> to vector<16x4xbf16>
    %c0_3 = arith.constant 0 : index
    %c0_4 = arith.constant 0 : index
    %5 = vector.load %arg2[%c0_3, %c0_4] : memref<4x16xf32, #tpu.memory_space<vmem>>, vector<4x16xf32>
    %6 = arith.truncf %5 : vector<4x16xf32> to vector<4x16xbf16>
    %7 = vector.extract_strided_slice %4 {offsets = [0, 0], sizes = [16, 1], strides = [1, 1]} : vector<16x4xbf16> to vector<16x1xbf16>
    %8 = vector.extract_strided_slice %6 {offsets = [0, 0], sizes = [1, 16], strides = [1, 1]} : vector<4x16xbf16> to vector<1x16xbf16>
    %9 = vector.broadcast %7 : vector<16x1xbf16> to vector<16x16xbf16>
    %10 = vector.broadcast %8 : vector<1x16xbf16> to vector<16x16xbf16>
    %11 = arith.addf %9, %10 : vector<16x16xbf16>
    %cst = arith.constant 1.000980e-02 : bf16
    %12 = vector.broadcast %cst : bf16 to vector<16x16xbf16>
    %13 = arith.mulf %12, %11 : vector<16x16xbf16>
    %14 = arith.maximumf %11, %13 : vector<16x16xbf16>
    %cst_5 = arith.constant -1.000260e+30 : bf16
    %15 = vector.broadcast %cst_5 : bf16 to vector<16x16xbf16>
    %16 = arith.select %2, %14, %15 : vector<16x16xi1>, vector<16x16xbf16>
    %cst_6 = arith.constant dense<0xFF80> : vector<16xbf16>
    %17 = vector.multi_reduction <maximumf>, %16, %cst_6 [0] : vector<16x16xbf16> to vector<16xbf16>
    %18 = vector.shape_cast %17 : vector<16xbf16> to vector<1x16xbf16>
    %19 = vector.broadcast %18 : vector<1x16xbf16> to vector<16x16xbf16>
    %20 = arith.subf %16, %19 : vector<16x16xbf16>
    %21 = math.exp %20 : vector<16x16xbf16>
    %22 = arith.extf %21 : vector<16x16xbf16> to vector<16x16xf32>
    %cst_7 = arith.constant dense<0.000000e+00> : vector<16xf32>
    %23 = vector.multi_reduction <add>, %22, %cst_7 [0] : vector<16x16xf32> to vector<16xf32>
    %24 = vector.shape_cast %23 : vector<16xf32> to vector<1x16xf32>
    %25 = tpu.reciprocal %24 {approx = true} : vector<1x16xf32> -> vector<1x16xf32>
    %c0_8 = arith.constant 0 : index
    %c0_9 = arith.constant 0 : index
    %c0_10 = arith.constant 0 : index
    %26 = vector.load %arg4[%c0_8, %c0_9, %c0_10] : memref<4x8x16xbf16, #tpu.memory_space<vmem>>, vector<1x8x16xbf16>
    %27 = vector.shape_cast %26 : vector<1x8x16xbf16> to vector<8x16xbf16>
    %cst_11 = arith.constant dense<0.000000e+00> : vector<8x16xf32>
    %28 = tpu.matmul %27, %21, %cst_11 {dimension_numbers = #tpu.dot_dimension_numbers<[1], [0], [0], [1], [0, 0, 1, 1], [], []>} : vector<8x16xbf16>, vector<16x16xbf16>, vector<8x16xf32> -> vector<8x16xf32>
    %29 = vector.broadcast %25 : vector<1x16xf32> to vector<8x16xf32>
    %30 = arith.mulf %28, %29 : vector<8x16xf32>
    %c0_12 = arith.constant 0 : index
    %c0_13 = arith.constant 0 : index
    %31 = vector.load %arg5[%c0_12, %c0_13] : memref<32x16xf32, #tpu.memory_space<vmem>>, vector<8x16xf32>
    tpu.vector_store %arg5[%c0_12, %c0_13], %30 {strides = array<i32>} : memref<32x16xf32, #tpu.memory_space<vmem>>, vector<8x16xf32>,
    %32 = vector.extract_strided_slice %4 {offsets = [0, 1], sizes = [16, 1], strides = [1, 1]} : vector<16x4xbf16> to vector<16x1xbf16>
    %33 = vector.extract_strided_slice %6 {offsets = [1, 0], sizes = [1, 16], strides = [1, 1]} : vector<4x16xbf16> to vector<1x16xbf16>
    %34 = vector.broadcast %32 : vector<16x1xbf16> to vector<16x16xbf16>
    %35 = vector.broadcast %33 : vector<1x16xbf16> to vector<16x16xbf16>
    %36 = arith.addf %34, %35 : vector<16x16xbf16>
    %cst_14 = arith.constant 1.000980e-02 : bf16
    %37 = vector.broadcast %cst_14 : bf16 to vector<16x16xbf16>
    %38 = arith.mulf %37, %36 : vector<16x16xbf16>
    %39 = arith.maximumf %36, %38 : vector<16x16xbf16>
    %cst_15 = arith.constant -1.000260e+30 : bf16
    %40 = vector.broadcast %cst_15 : bf16 to vector<16x16xbf16>
    %41 = arith.select %2, %39, %40 : vector<16x16xi1>, vector<16x16xbf16>
    %cst_16 = arith.constant dense<0xFF80> : vector<16xbf16>
    %42 = vector.multi_reduction <maximumf>, %41, %cst_16 [0] : vector<16x16xbf16> to vector<16xbf16>
    %43 = vector.shape_cast %42 : vector<16xbf16> to vector<1x16xbf16>
    %44 = vector.broadcast %43 : vector<1x16xbf16> to vector<16x16xbf16>
    %45 = arith.subf %41, %44 : vector<16x16xbf16>
    %46 = math.exp %45 : vector<16x16xbf16>
    %47 = arith.extf %46 : vector<16x16xbf16> to vector<16x16xf32>
    %cst_17 = arith.constant dense<0.000000e+00> : vector<16xf32>
    %48 = vector.multi_reduction <add>, %47, %cst_17 [0] : vector<16x16xf32> to vector<16xf32>
    %49 = vector.shape_cast %48 : vector<16xf32> to vector<1x16xf32>
    %50 = tpu.reciprocal %49 {approx = true} : vector<1x16xf32> -> vector<1x16xf32>
    %c1 = arith.constant 1 : index
    %c0_18 = arith.constant 0 : index
    %c0_19 = arith.constant 0 : index
    %51 = vector.load %arg4[%c1, %c0_18, %c0_19] : memref<4x8x16xbf16, #tpu.memory_space<vmem>>, vector<1x8x16xbf16>
    %52 = vector.shape_cast %51 : vector<1x8x16xbf16> to vector<8x16xbf16>
    %cst_20 = arith.constant dense<0.000000e+00> : vector<8x16xf32>
    %53 = tpu.matmul %52, %46, %cst_20 {dimension_numbers = #tpu.dot_dimension_numbers<[1], [0], [0], [1], [0, 0, 1, 1], [], []>} : vector<8x16xbf16>, vector<16x16xbf16>, vector<8x16xf32> -> vector<8x16xf32>
    %54 = vector.broadcast %50 : vector<1x16xf32> to vector<8x16xf32>
    %55 = arith.mulf %53, %54 : vector<8x16xf32>
    %c8 = arith.constant 8 : index
    %c0_21 = arith.constant 0 : index
    %56 = vector.load %arg5[%c8, %c0_21] : memref<32x16xf32, #tpu.memory_space<vmem>>, vector<8x16xf32>
    tpu.vector_store %arg5[%c8, %c0_21], %55 {strides = array<i32>} : memref<32x16xf32, #tpu.memory_space<vmem>>, vector<8x16xf32>,
    %57 = vector.extract_strided_slice %4 {offsets = [0, 2], sizes = [16, 1], strides = [1, 1]} : vector<16x4xbf16> to vector<16x1xbf16>
    %58 = vector.extract_strided_slice %6 {offsets = [2, 0], sizes = [1, 16], strides = [1, 1]} : vector<4x16xbf16> to vector<1x16xbf16>
    %59 = vector.broadcast %57 : vector<16x1xbf16> to vector<16x16xbf16>
    %60 = vector.broadcast %58 : vector<1x16xbf16> to vector<16x16xbf16>
    %61 = arith.addf %59, %60 : vector<16x16xbf16>
    %cst_22 = arith.constant 1.000980e-02 : bf16
    %62 = vector.broadcast %cst_22 : bf16 to vector<16x16xbf16>
    %63 = arith.mulf %62, %61 : vector<16x16xbf16>
    %64 = arith.maximumf %61, %63 : vector<16x16xbf16>
    %cst_23 = arith.constant -1.000260e+30 : bf16
    %65 = vector.broadcast %cst_23 : bf16 to vector<16x16xbf16>
    %66 = arith.select %2, %64, %65 : vector<16x16xi1>, vector<16x16xbf16>
    %cst_24 = arith.constant dense<0xFF80> : vector<16xbf16>
    %67 = vector.multi_reduction <maximumf>, %66, %cst_24 [0] : vector<16x16xbf16> to vector<16xbf16>
    %68 = vector.shape_cast %67 : vector<16xbf16> to vector<1x16xbf16>
    %69 = vector.broadcast %68 : vector<1x16xbf16> to vector<16x16xbf16>
    %70 = arith.subf %66, %69 : vector<16x16xbf16>
    %71 = math.exp %70 : vector<16x16xbf16>
    %72 = arith.extf %71 : vector<16x16xbf16> to vector<16x16xf32>
    %cst_25 = arith.constant dense<0.000000e+00> : vector<16xf32>
    %73 = vector.multi_reduction <add>, %72, %cst_25 [0] : vector<16x16xf32> to vector<16xf32>
    %74 = vector.shape_cast %73 : vector<16xf32> to vector<1x16xf32>
    %75 = tpu.reciprocal %74 {approx = true} : vector<1x16xf32> -> vector<1x16xf32>
    %c2 = arith.constant 2 : index
    %c0_26 = arith.constant 0 : index
    %c0_27 = arith.constant 0 : index
    %76 = vector.load %arg4[%c2, %c0_26, %c0_27] : memref<4x8x16xbf16, #tpu.memory_space<vmem>>, vector<1x8x16xbf16>
    %77 = vector.shape_cast %76 : vector<1x8x16xbf16> to vector<8x16xbf16>
    %cst_28 = arith.constant dense<0.000000e+00> : vector<8x16xf32>
    %78 = tpu.matmul %77, %71, %cst_28 {dimension_numbers = #tpu.dot_dimension_numbers<[1], [0], [0], [1], [0, 0, 1, 1], [], []>} : vector<8x16xbf16>, vector<16x16xbf16>, vector<8x16xf32> -> vector<8x16xf32>
    %79 = vector.broadcast %75 : vector<1x16xf32> to vector<8x16xf32>
    %80 = arith.mulf %78, %79 : vector<8x16xf32>
    %c16 = arith.constant 16 : index
    %c0_29 = arith.constant 0 : index
    %81 = vector.load %arg5[%c16, %c0_29] : memref<32x16xf32, #tpu.memory_space<vmem>>, vector<8x16xf32>
    tpu.vector_store %arg5[%c16, %c0_29], %80 {strides = array<i32>} : memref<32x16xf32, #tpu.memory_space<vmem>>, vector<8x16xf32>,
    %82 = vector.extract_strided_slice %4 {offsets = [0, 3], sizes = [16, 1], strides = [1, 1]} : vector<16x4xbf16> to vector<16x1xbf16>
    %83 = vector.extract_strided_slice %6 {offsets = [3, 0], sizes = [1, 16], strides = [1, 1]} : vector<4x16xbf16> to vector<1x16xbf16>
    %84 = vector.broadcast %82 : vector<16x1xbf16> to vector<16x16xbf16>
    %85 = vector.broadcast %83 : vector<1x16xbf16> to vector<16x16xbf16>
    %86 = arith.addf %84, %85 : vector<16x16xbf16>
    %cst_30 = arith.constant 1.000980e-02 : bf16
    %87 = vector.broadcast %cst_30 : bf16 to vector<16x16xbf16>
    %88 = arith.mulf %87, %86 : vector<16x16xbf16>
    %89 = arith.maximumf %86, %88 : vector<16x16xbf16>
    %cst_31 = arith.constant -1.000260e+30 : bf16
    %90 = vector.broadcast %cst_31 : bf16 to vector<16x16xbf16>
    %91 = arith.select %2, %89, %90 : vector<16x16xi1>, vector<16x16xbf16>
    %cst_32 = arith.constant dense<0xFF80> : vector<16xbf16>
    %92 = vector.multi_reduction <maximumf>, %91, %cst_32 [0] : vector<16x16xbf16> to vector<16xbf16>
    %93 = vector.shape_cast %92 : vector<16xbf16> to vector<1x16xbf16>
    %94 = vector.broadcast %93 : vector<1x16xbf16> to vector<16x16xbf16>
    %95 = arith.subf %91, %94 : vector<16x16xbf16>
    %96 = math.exp %95 : vector<16x16xbf16>
    %97 = arith.extf %96 : vector<16x16xbf16> to vector<16x16xf32>
    %cst_33 = arith.constant dense<0.000000e+00> : vector<16xf32>
    %98 = vector.multi_reduction <add>, %97, %cst_33 [0] : vector<16x16xf32> to vector<16xf32>
    %99 = vector.shape_cast %98 : vector<16xf32> to vector<1x16xf32>
    %100 = tpu.reciprocal %99 {approx = true} : vector<1x16xf32> -> vector<1x16xf32>
    %c3 = arith.constant 3 : index
    %c0_34 = arith.constant 0 : index
    %c0_35 = arith.constant 0 : index
    %101 = vector.load %arg4[%c3, %c0_34, %c0_35] : memref<4x8x16xbf16, #tpu.memory_space<vmem>>, vector<1x8x16xbf16>
    %102 = vector.shape_cast %101 : vector<1x8x16xbf16> to vector<8x16xbf16>
    %cst_36 = arith.constant dense<0.000000e+00> : vector<8x16xf32>
    %103 = tpu.matmul %102, %96, %cst_36 {dimension_numbers = #tpu.dot_dimension_numbers<[1], [0], [0], [1], [0, 0, 1, 1], [], []>} : vector<8x16xbf16>, vector<16x16xbf16>, vector<8x16xf32> -> vector<8x16xf32>
    %104 = vector.broadcast %100 : vector<1x16xf32> to vector<8x16xf32>
    %105 = arith.mulf %103, %104 : vector<8x16xf32>
    %c24 = arith.constant 24 : index
    %c0_37 = arith.constant 0 : index
    %106 = vector.load %arg5[%c24, %c0_37] : memref<32x16xf32, #tpu.memory_space<vmem>>, vector<8x16xf32>
    tpu.vector_store %arg5[%c24, %c0_37], %105 {strides = array<i32>} : memref<32x16xf32, #tpu.memory_space<vmem>>, vector<8x16xf32>,
    return
  }
  func.func @transform_0(%arg0: i32) -> (i32, i32) {
    %c0_i32 = arith.constant 0 : i32
    %c0_i32_0 = arith.constant 0 : i32
    return %c0_i32, %arg0 : i32, i32
  }
  func.func @transform_1(%arg0: i32) -> (i32, i32) {
    %c0_i32 = arith.constant 0 : i32
    %c0_i32_0 = arith.constant 0 : i32
    return %c0_i32, %arg0 : i32, i32
  }
  func.func @transform_2(%arg0: i32) -> (i32, i32) {
    %c0_i32 = arith.constant 0 : i32
    %c0_i32_0 = arith.constant 0 : i32
    %c0_i32_1 = arith.constant 0 : i32
    return %c0_i32, %c0_i32_0 : i32, i32
  }
  func.func @transform_3(%arg0: i32) -> (i32, i32, i32) {
    %c0_i32 = arith.constant 0 : i32
    %c0_i32_0 = arith.constant 0 : i32
    %c0_i32_1 = arith.constant 0 : i32
    %c0_i32_2 = arith.constant 0 : i32
    return %c0_i32, %c0_i32_0, %c0_i32_1 : i32, i32, i32
  }
  func.func @transform_4(%arg0: i32) -> (i32, i32) {
    %c0_i32 = arith.constant 0 : i32
    %c0_i32_0 = arith.constant 0 : i32
    return %c0_i32, %arg0 : i32, i32
  }
}

</mosaic_0001>

<llo_original>
// kernel: tpu_custom_call.1
$region0: #{tpu_custom_call.1}
  #allocation0 [shape = 'u32[]', space=smem, size = 0x4, offset = 0x4, fixed_abs, tag = 'smem constant byte address 0x4 - core index']
  #allocation1 [shape = 'u32[144,128]{1,0:T(1,128)}', space=vmem, size = 0x12000, scoped, tag = 'internal scratch']
  %s0 = inlined_call_operand.vmem [shape: s8[16,16], index: 0, kind: input, shape index: {}]
  %s1 = inlined_call_operand.vmem [shape: f32[4,16], index: 1, kind: input, shape index: {}]
  %s2 = inlined_call_operand.vmem [shape: f32[16,4], index: 2, kind: input, shape index: {}]
  %s3 = inlined_call_operand.vmem [shape: bf16[4,8,16], index: 3, kind: input, shape index: {}]
  %s4 = inlined_call_operand.vmem [shape: f32[32,16], index: 4, kind: output, shape index: {}]
  %s5 = sld [smem:[#allocation0]]
  $region26: #{tpu_custom_call.1} parent=0
    _
  %s7 = ssub.s32 1, %s5
  %s8 = scalar_select 0, %s7, %s5
  // Predicated region
  $region2: #{tpu_custom_call.1} parent=0 // pred_check
    _
  $region3: #{tpu_custom_call.1} parent=0 // pred_check_branch
    %10 = sbr.rel (0) target = $region5
  $region4: #{tpu_custom_call.1} parent=0 // pred_region
    _
  $region5: #{tpu_custom_call.1} parent=0 // pred_fallthru
    _
  // Predicated region
  $region6: #{tpu_custom_call.1} parent=0 // pred_check
    _
  $region7: #{tpu_custom_call.1} parent=0 // pred_check_branch
    %12 = sbr.rel (0) target = $region9
  $region8: #{tpu_custom_call.1} parent=0 // pred_region
    _
  $region9: #{tpu_custom_call.1} parent=0 // pred_fallthru
    _
  // Predicated region
  $region10: #{tpu_custom_call.1} parent=0 // pred_check
    _
  $region11: #{tpu_custom_call.1} parent=0 // pred_check_branch
    %14 = sbr.rel (0) target = $region13
  $region12: #{tpu_custom_call.1} parent=0 // pred_region
    _
  $region13: #{tpu_custom_call.1} parent=0 // pred_fallthru
    _
  // Predicated region
  $region14: #{tpu_custom_call.1} parent=0 // pred_check
    _
  $region15: #{tpu_custom_call.1} parent=0 // pred_check_branch
    %16 = sbr.rel (0) target = $region17
  $region16: #{tpu_custom_call.1} parent=0 // pred_region
    _
  $region17: #{tpu_custom_call.1} parent=0 // pred_fallthru
    _
  %v25 = vld [vmem:[%s0] sm:$0x3]
  %v26 = vld [vmem:[%s0 + $0x2] sm:$0x3]
  %vm27 = vnez %v25
  %vm28 = vnez %v26
  %v29 = vld [vmem:[%s2] sm:$0xff]
  %v30 = vld [vmem:[%s2 + $0x8] sm:$0xff]
  %v31 = vpack.c.bf16 %v30, %v29
  %v32 = vld [vmem:[%s1] sm:$0xf]
  %v33 = vpack.c.bf16 %v32, %v32
  %35 = vset.pattern.permute.xlu0 0
  %36 = vperm.xlu0 %35, %v31
  %v37 = vpop.permute.xlu0 %36
  %v40 = vpack.i.b16 %v33, %v33
  %v42 = vlaneseq
  %v43 = vshrl.u32 %v42, 7
  %v44 = vsub.s32 0, %v43
  %v45 = vrot.slane %v40, %v44
  %v46 = vadd.bf16 %v37, %v45
  %v47 = vmul.bf16 %v46, 1009007652
  %v48 = vmax.bf16 %v46, %v47
  %v49 = vsel %vm27, 16843009, 0
  %v50 = vsel %vm28, 16843009, 0
  %v51 = vunpack.c.1.s8 %v49
  %v52 = vunpack.c.0.s8 %v49
  %v53 = vpack.c.b16 %v51, %v52
  %v54 = vunpack.c.1.s8 %v50
  %v55 = vunpack.c.0.s8 %v50
  %v56 = vpack.c.b16 %v54, %v55
  %vm57 = vcmp.ne.s16.totalorder %v53, 0
  %vm58 = vcmp.ne.s16.totalorder %v56, 0
  %v59 = vsel %vm57, 65537, 0
  %v60 = vsel %vm58, 65537, 0
  %v61 = vunpack.c.l.b16 %v59
  %v62 = vunpack.c.l.b16 %v60
  %v63 = vpack.c.b16 %v62, %v61
  %vm64 = vcmp.ne.s16.totalorder %v63, 0
  %v65 = vsel %vm64, %v48, 4048220490
  %vm66 = vcmask 130048
  %v69 = vsel %vm66, %v65, 4286644096
  %v71 = vunpack.i.l.bf16 %v69
  %v72 = vunpack.i.h.bf16 %v69
  %v73 = vmax.f32 %v71, %v72
  %v74 = vrot.slane %v73, 4
  %v75 = vmax.f32 %v73, %v74
  %v76 = vrot.slane %v75, 2
  %v77 = vmax.f32 %v75, %v76
  %v78 = vrot.slane %v77, 1
  %v79 = vmax.f32 %v77, %v78
  %v80 = vpack.i.bf16 %v79, %v79
  %v81 = vsub.bf16 %v65, %v80
  %v83 = vmul.bf16 %v81, 1069105081
  %v84 = vpow.bf16.pop %v83
  %v85 = vunpack.c.l.bf16 %v84
  %v86 = vunpack.c.h.bf16 %v84
  %v87 = vsel %vm66, %v85, 0.0
  %v88 = vsel %vm66, %v86, 0.0
  %v89 = vadd.f32 %v87, %v88
  %v90 = vrot.slane %v89, 4
  %v91 = vadd.f32 %v89, %v90
  %v92 = vrot.slane %v91, 2
  %v93 = vadd.f32 %v91, %v92
  %v94 = vrot.slane %v93, 1
  %v95 = vadd.f32 %v93, %v94
  %v96 = vrcp.pop %v95
  %v97 = vld [vmem:[%s3] sm:$0xf]
  %v99 = vsel %vm66, %v97, 0
  %101 = vmatprep.subr.bf16.mxu0 0
  %102 = vmatpush1.bf16.msra.mxu0 0
  %103 = vmatprep.subr.bf16.mxu0 0
  %104 = vmatpush1.bf16.msra.mxu0 0
  %105 = vmatprep.subr.bf16.mxu0 0
  %106 = vmatpush1.bf16.msra.mxu0 0
  %107 = vmatprep.subr.bf16.mxu0 0
  %108 = vmatpush1.bf16.msra.mxu0 0
  %109 = vmatprep.subr.bf16.mxu0 0
  %110 = vmatpush1.bf16.msra.mxu0 0
  %111 = vmatprep.subr.bf16.mxu0 0
  %112 = vmatpush1.bf16.msra.mxu0 0
  %113 = vmatprep.subr.bf16.mxu0 0
  %114 = vmatpush1.bf16.msra.mxu0 0
  %115 = vmatprep.subr.bf16.mxu0 0
  %116 = vmatpush1.bf16.msra.mxu0 %v84
  %117 = vmatprep.subr.bf16.mxu0 0
  %118 = vmatpush2.bf16.msra.mxu0 0
  %119 = vmatprep.subr.bf16.mxu0 0
  %120 = vmatpush2.bf16.msra.mxu0 0
  %121 = vmatprep.subr.bf16.mxu0 0
  %122 = vmatpush2.bf16.msra.mxu0 0
  %123 = vmatprep.subr.bf16.mxu0 0
  %124 = vmatpush2.bf16.msra.mxu0 0
  %125 = vmatprep.subr.bf16.mxu0 0
  %126 = vmatpush2.bf16.msra.mxu0 0
  %127 = vmatprep.subr.bf16.mxu0 0
  %128 = vmatpush2.bf16.msra.mxu0 0
  %129 = vmatprep.subr.bf16.mxu0 0
  %130 = vmatpush2.bf16.msra.mxu0 0
  %131 = vmatprep.subr.bf16.mxu0 0
  %132 = vmatpush2.bf16.msra.mxu0 0
  %133 = vmatprep.mubr.bf16.mxu0 0
  %134 = vmatmul.mubr.bf16.gmra.mxu0 %v99
  %v135 = vpop.f32.mrf.mxu0
  %v136 = vadd.f32 0.0, %v135
  %v137 = vpop.f32.mrf.mxu0
  %v138 = vpop.f32.mrf.mxu0
  %v139 = vpop.f32.mrf.mxu0
  %140 = vdwg.mxu0
  %v141 = vmul.f32 %v136, %v96
  %142 = vst.msk [vmem:[%s4] sm:$0xff] %vm66, %v141
  %143 = vset.pattern.permute.xlu0 1
  %144 = vperm.xlu0 %143, %v31
  %v145 = vpop.permute.xlu0 %144
  %v147 = vshrl.u32 %v33, 16
  %v148 = vpack.i.b16 %v147, %v147
  %v150 = vlaneseq
  %v151 = vshrl.u32 %v150, 7
  %v152 = vsub.s32 0, %v151
  %v153 = vrot.slane %v148, %v152
  %v154 = vadd.bf16 %v145, %v153
  %v155 = vmul.bf16 %v154, 1009007652
  %v156 = vmax.bf16 %v154, %v155
  %v157 = vsel %vm64, %v156, 4048220490
  %v159 = vsel %vm66, %v157, 4286644096
  %v161 = vunpack.i.l.bf16 %v159
  %v162 = vunpack.i.h.bf16 %v159
  %v163 = vmax.f32 %v161, %v162
  %v164 = vrot.slane %v163, 4
  %v165 = vmax.f32 %v163, %v164
  %v166 = vrot.slane %v165, 2
  %v167 = vmax.f32 %v165, %v166
  %v168 = vrot.slane %v167, 1
  %v169 = vmax.f32 %v167, %v168
  %v170 = vpack.i.bf16 %v169, %v169
  %v171 = vsub.bf16 %v157, %v170
  %v173 = vmul.bf16 %v171, 1069105081
  %v174 = vpow.bf16.pop %v173
  %v175 = vunpack.c.l.bf16 %v174
  %v176 = vunpack.c.h.bf16 %v174
  %v177 = vsel %vm66, %v175, 0.0
  %v178 = vsel %vm66, %v176, 0.0
  %v179 = vadd.f32 %v177, %v178
  %v180 = vrot.slane %v179, 4
  %v181 = vadd.f32 %v179, %v180
  %v182 = vrot.slane %v181, 2
  %v183 = vadd.f32 %v181, %v182
  %v184 = vrot.slane %v183, 1
  %v185 = vadd.f32 %v183, %v184
  %v186 = vrcp.pop %v185
  %s187 = scalar_lea.vmem %s3, 4
  %v188 = vld [vmem:[%s187] sm:$0xf]
  %v190 = vsel %vm66, %v188, 0
  %192 = vmatprep.subr.bf16.mxu0 0
  %193 = vmatpush1.bf16.msra.mxu0 0
  %194 = vmatprep.subr.bf16.mxu0 0
  %195 = vmatpush1.bf16.msra.mxu0 0
  %196 = vmatprep.subr.bf16.mxu0 0
  %197 = vmatpush1.bf16.msra.mxu0 0
  %198 = vmatprep.subr.bf16.mxu0 0
  %199 = vmatpush1.bf16.msra.mxu0 0
  %200 = vmatprep.subr.bf16.mxu0 0
  %201 = vmatpush1.bf16.msra.mxu0 0
  %202 = vmatprep.subr.bf16.mxu0 0
  %203 = vmatpush1.bf16.msra.mxu0 0
  %204 = vmatprep.subr.bf16.mxu0 0
  %205 = vmatpush1.bf16.msra.mxu0 0
  %206 = vmatprep.subr.bf16.mxu0 0
  %207 = vmatpush1.bf16.msra.mxu0 %v174
  %208 = vmatprep.subr.bf16.mxu0 0
  %209 = vmatpush2.bf16.msra.mxu0 0
  %210 = vmatprep.subr.bf16.mxu0 0
  %211 = vmatpush2.bf16.msra.mxu0 0
  %212 = vmatprep.subr.bf16.mxu0 0
  %213 = vmatpush2.bf16.msra.mxu0 0
  %214 = vmatprep.subr.bf16.mxu0 0
  %215 = vmatpush2.bf16.msra.mxu0 0
  %216 = vmatprep.subr.bf16.mxu0 0
  %217 = vmatpush2.bf16.msra.mxu0 0
  %218 = vmatprep.subr.bf16.mxu0 0
  %219 = vmatpush2.bf16.msra.mxu0 0
  %220 = vmatprep.subr.bf16.mxu0 0
  %221 = vmatpush2.bf16.msra.mxu0 0
  %222 = vmatprep.subr.bf16.mxu0 0
  %223 = vmatpush2.bf16.msra.mxu0 0
  %224 = vmatprep.mubr.bf16.mxu0 0
  %225 = vmatmul.mubr.bf16.gmra.mxu0 %v190
  %v226 = vpop.f32.mrf.mxu0
  %v227 = vadd.f32 0.0, %v226
  %v228 = vpop.f32.mrf.mxu0
  %v229 = vpop.f32.mrf.mxu0
  %v230 = vpop.f32.mrf.mxu0
  %231 = vdwg.mxu0
  %v232 = vmul.f32 %v227, %v186
  %233 = vst.msk [vmem:[%s4 + $0x8] sm:$0xff] %vm66, %v232
  %234 = vset.pattern.permute.xlu0 2
  %235 = vperm.xlu0 %234, %v31
  %v236 = vpop.permute.xlu0 %235
  %v238 = vlaneseq
  %v239 = vshrl.u32 %v238, 7
  %v240 = vsub.s32 1, %v239
  %v241 = vrot.slane %v40, %v240
  %v242 = vadd.bf16 %v236, %v241
  %v243 = vmul.bf16 %v242, 1009007652
  %v244 = vmax.bf16 %v242, %v243
  %v245 = vsel %vm64, %v244, 4048220490
  %v247 = vsel %vm66, %v245, 4286644096
  %v249 = vunpack.i.l.bf16 %v247
  %v250 = vunpack.i.h.bf16 %v247
  %v251 = vmax.f32 %v249, %v250
  %v252 = vrot.slane %v251, 4
  %v253 = vmax.f32 %v251, %v252
  %v254 = vrot.slane %v253, 2
  %v255 = vmax.f32 %v253, %v254
  %v256 = vrot.slane %v255, 1
  %v257 = vmax.f32 %v255, %v256
  %v258 = vpack.i.bf16 %v257, %v257
  %v259 = vsub.bf16 %v245, %v258
  %v261 = vmul.bf16 %v259, 1069105081
  %v262 = vpow.bf16.pop %v261
  %v263 = vunpack.c.l.bf16 %v262
  %v264 = vunpack.c.h.bf16 %v262
  %v265 = vsel %vm66, %v263, 0.0
  %v266 = vsel %vm66, %v264, 0.0
  %v267 = vadd.f32 %v265, %v266
  %v268 = vrot.slane %v267, 4
  %v269 = vadd.f32 %v267, %v268
  %v270 = vrot.slane %v269, 2
  %v271 = vadd.f32 %v269, %v270
  %v272 = vrot.slane %v271, 1
  %v273 = vadd.f32 %v271, %v272
  %v274 = vrcp.pop %v273
  %s275 = scalar_lea.vmem %s3, 8
  %v276 = vld [vmem:[%s275] sm:$0xf]
  %v278 = vsel %vm66, %v276, 0
  %280 = vmatprep.subr.bf16.mxu0 0
  %281 = vmatpush1.bf16.msra.mxu0 0
  %282 = vmatprep.subr.bf16.mxu0 0
  %283 = vmatpush1.bf16.msra.mxu0 0
  %284 = vmatprep.subr.bf16.mxu0 0
  %285 = vmatpush1.bf16.msra.mxu0 0
  %286 = vmatprep.subr.bf16.mxu0 0
  %287 = vmatpush1.bf16.msra.mxu0 0
  %288 = vmatprep.subr.bf16.mxu0 0
  %289 = vmatpush1.bf16.msra.mxu0 0
  %290 = vmatprep.subr.bf16.mxu0 0
  %291 = vmatpush1.bf16.msra.mxu0 0
  %292 = vmatprep.subr.bf16.mxu0 0
  %293 = vmatpush1.bf16.msra.mxu0 0
  %294 = vmatprep.subr.bf16.mxu0 0
  %295 = vmatpush1.bf16.msra.mxu0 %v262
  %296 = vmatprep.subr.bf16.mxu0 0
  %297 = vmatpush2.bf16.msra.mxu0 0
  %298 = vmatprep.subr.bf16.mxu0 0
  %299 = vmatpush2.bf16.msra.mxu0 0
  %300 = vmatprep.subr.bf16.mxu0 0
  %301 = vmatpush2.bf16.msra.mxu0 0
  %302 = vmatprep.subr.bf16.mxu0 0
  %303 = vmatpush2.bf16.msra.mxu0 0
  %304 = vmatprep.subr.bf16.mxu0 0
  %305 = vmatpush2.bf16.msra.mxu0 0
  %306 = vmatprep.subr.bf16.mxu0 0
  %307 = vmatpush2.bf16.msra.mxu0 0
  %308 = vmatprep.subr.bf16.mxu0 0
  %309 = vmatpush2.bf16.msra.mxu0 0
  %310 = vmatprep.subr.bf16.mxu0 0
  %311 = vmatpush2.bf16.msra.mxu0 0
  %312 = vmatprep.mubr.bf16.mxu0 0
  %313 = vmatmul.mubr.bf16.gmra.mxu0 %v278
  %v314 = vpop.f32.mrf.mxu0
  %v315 = vadd.f32 0.0, %v314
  %v316 = vpop.f32.mrf.mxu0
  %v317 = vpop.f32.mrf.mxu0
  %v318 = vpop.f32.mrf.mxu0
  %319 = vdwg.mxu0
  %v320 = vmul.f32 %v315, %v274
  %321 = vst.msk [vmem:[%s4 + $0x10] sm:$0xff] %vm66, %v320
  %322 = vset.pattern.permute.xlu0 3
  %323 = vperm.xlu0 %322, %v31
  %v324 = vpop.permute.xlu0 %323
  %v326 = vlaneseq
  %v327 = vshrl.u32 %v326, 7
  %v328 = vsub.s32 1, %v327
  %v329 = vrot.slane %v148, %v328
  %v330 = vadd.bf16 %v324, %v329
  %v331 = vmul.bf16 %v330, 1009007652
  %v332 = vmax.bf16 %v330, %v331
  %v333 = vsel %vm64, %v332, 4048220490
  %v335 = vsel %vm66, %v333, 4286644096
  %v337 = vunpack.i.l.bf16 %v335
  %v338 = vunpack.i.h.bf16 %v335
  %v339 = vmax.f32 %v337, %v338
  %v340 = vrot.slane %v339, 4
  %v341 = vmax.f32 %v339, %v340
  %v342 = vrot.slane %v341, 2
  %v343 = vmax.f32 %v341, %v342
  %v344 = vrot.slane %v343, 1
  %v345 = vmax.f32 %v343, %v344
  %v346 = vpack.i.bf16 %v345, %v345
  %v347 = vsub.bf16 %v333, %v346
  %v349 = vmul.bf16 %v347, 1069105081
  %v350 = vpow.bf16.pop %v349
  %v351 = vunpack.c.l.bf16 %v350
  %v352 = vunpack.c.h.bf16 %v350
  %v353 = vsel %vm66, %v351, 0.0
  %v354 = vsel %vm66, %v352, 0.0
  %v355 = vadd.f32 %v353, %v354
  %v356 = vrot.slane %v355, 4
  %v357 = vadd.f32 %v355, %v356
  %v358 = vrot.slane %v357, 2
  %v359 = vadd.f32 %v357, %v358
  %v360 = vrot.slane %v359, 1
  %v361 = vadd.f32 %v359, %v360
  %v362 = vrcp.pop %v361
  %s363 = scalar_lea.vmem %s3, 12
  %v364 = vld [vmem:[%s363] sm:$0xf]
  %v366 = vsel %vm66, %v364, 0
  %368 = vmatprep.subr.bf16.mxu0 0
  %369 = vmatpush1.bf16.msra.mxu0 0
  %370 = vmatprep.subr.bf16.mxu0 0
  %371 = vmatpush1.bf16.msra.mxu0 0
  %372 = vmatprep.subr.bf16.mxu0 0
  %373 = vmatpush1.bf16.msra.mxu0 0
  %374 = vmatprep.subr.bf16.mxu0 0
  %375 = vmatpush1.bf16.msra.mxu0 0
  %376 = vmatprep.subr.bf16.mxu0 0
  %377 = vmatpush1.bf16.msra.mxu0 0
  %378 = vmatprep.subr.bf16.mxu0 0
  %379 = vmatpush1.bf16.msra.mxu0 0
  %380 = vmatprep.subr.bf16.mxu0 0
  %381 = vmatpush1.bf16.msra.mxu0 0
  %382 = vmatprep.subr.bf16.mxu0 0
  %383 = vmatpush1.bf16.msra.mxu0 %v350
  %384 = vmatprep.subr.bf16.mxu0 0
  %385 = vmatpush2.bf16.msra.mxu0 0
  %386 = vmatprep.subr.bf16.mxu0 0
  %387 = vmatpush2.bf16.msra.mxu0 0
  %388 = vmatprep.subr.bf16.mxu0 0
  %389 = vmatpush2.bf16.msra.mxu0 0
  %390 = vmatprep.subr.bf16.mxu0 0
  %391 = vmatpush2.bf16.msra.mxu0 0
  %392 = vmatprep.subr.bf16.mxu0 0
  %393 = vmatpush2.bf16.msra.mxu0 0
  %394 = vmatprep.subr.bf16.mxu0 0
  %395 = vmatpush2.bf16.msra.mxu0 0
  %396 = vmatprep.subr.bf16.mxu0 0
  %397 = vmatpush2.bf16.msra.mxu0 0
  %398 = vmatprep.subr.bf16.mxu0 0
  %399 = vmatpush2.bf16.msra.mxu0 0
  %400 = vmatprep.mubr.bf16.mxu0 0
  %401 = vmatmul.mubr.bf16.gmra.mxu0 %v366
  %v402 = vpop.f32.mrf.mxu0
  %v403 = vadd.f32 0.0, %v402
  %v404 = vpop.f32.mrf.mxu0
  %v405 = vpop.f32.mrf.mxu0
  %v406 = vpop.f32.mrf.mxu0
  %407 = vdwg.mxu0
  %v408 = vmul.f32 %v403, %v362
  %409 = vst.msk [vmem:[%s4 + $0x18] sm:$0xff] %vm66, %v408
  // Predicated region
  $region18: #{tpu_custom_call.1} parent=0 // pred_check
    _
  $region19: #{tpu_custom_call.1} parent=0 // pred_check_branch
    %411 = sbr.rel (0) target = $region21
  $region20: #{tpu_custom_call.1} parent=0 // pred_region
    _
  $region21: #{tpu_custom_call.1} parent=0 // pred_fallthru
    _
  // Predicated region
  $region22: #{tpu_custom_call.1} parent=0 // pred_check
    _
  $region23: #{tpu_custom_call.1} parent=0 // pred_check_branch
    %413 = sbr.rel (0) target = $region25
  $region24: #{tpu_custom_call.1} parent=0 // pred_region
    _
  $region25: #{tpu_custom_call.1} parent=0 // pred_fallthru
    _

// kernel: tpu_custom_call.1
$region0: #{tpu_custom_call.1}
  #allocation0 [shape = 'u32[]', space=smem, size = 0x4, offset = 0x4, fixed_abs, tag = 'smem constant byte address 0x4 - core index']
  #allocation1 [shape = 'u32[144,128]{1,0:T(1,128)}', space=vmem, size = 0x12000, scoped, tag = 'internal scratch']
  %s0 = inlined_call_operand.vmem [shape: s8[16,16], index: 0, kind: input, shape index: {}]
  %s1 = inlined_call_operand.vmem [shape: f32[4,16], index: 1, kind: input, shape index: {}]
  %s2 = inlined_call_operand.vmem [shape: f32[16,4], index: 2, kind: input, shape index: {}]
  %s3 = inlined_call_operand.vmem [shape: bf16[4,8,16], index: 3, kind: input, shape index: {}]
  %s4 = inlined_call_operand.vmem [shape: f32[32,16], index: 4, kind: output, shape index: {}]
  %s5 = sld [smem:[#allocation0]]
  $region26: #{tpu_custom_call.1} parent=0
    _
  %s7 = ssub.s32 1, %s5
  %s8 = scalar_select 0, %s7, %s5
  // Predicated region
  $region2: #{tpu_custom_call.1} parent=0 // pred_check
    _
  $region3: #{tpu_custom_call.1} parent=0 // pred_check_branch
    %10 = sbr.rel (0) target = $region5
  $region4: #{tpu_custom_call.1} parent=0 // pred_region
    _
  $region5: #{tpu_custom_call.1} parent=0 // pred_fallthru
    _
  // Predicated region
  $region6: #{tpu_custom_call.1} parent=0 // pred_check
    _
  $region7: #{tpu_custom_call.1} parent=0 // pred_check_branch
    %12 = sbr.rel (0) target = $region9
  $region8: #{tpu_custom_call.1} parent=0 // pred_region
    _
  $region9: #{tpu_custom_call.1} parent=0 // pred_fallthru
    _
  // Predicated region
  $region10: #{tpu_custom_call.1} parent=0 // pred_check
    _
  $region11: #{tpu_custom_call.1} parent=0 // pred_check_branch
    %14 = sbr.rel (0) target = $region13
  $region12: #{tpu_custom_call.1} parent=0 // pred_region
    _
  $region13: #{tpu_custom_call.1} parent=0 // pred_fallthru
    _
  // Predicated region
  $region14: #{tpu_custom_call.1} parent=0 // pred_check
    _
  $region15: #{tpu_custom_call.1} parent=0 // pred_check_branch
    %16 = sbr.rel (0) target = $region17
  $region16: #{tpu_custom_call.1} parent=0 // pred_region
    _
  $region17: #{tpu_custom_call.1} parent=0 // pred_fallthru
    _
  %v25 = vld [vmem:[%s0] sm:$0x3]
  %v26 = vld [vmem:[%s0 + $0x2] sm:$0x3]
  %vm27 = vnez %v25
  %vm28 = vnez %v26
  %v29 = vld [vmem:[%s2] sm:$0xff]
  %v30 = vld [vmem:[%s2 + $0x8] sm:$0xff]
  %v31 = vpack.c.bf16 %v30, %v29
  %v32 = vld [vmem:[%s1] sm:$0xf]
  %v33 = vpack.c.bf16 %v32, %v32
  %35 = vset.pattern.permute.xlu0 0
  %36 = vperm.xlu0 %35, %v31
  %v37 = vpop.permute.xlu0 %36
  %v40 = vpack.i.b16 %v33, %v33
  %v42 = vlaneseq
  %v43 = vshrl.u32 %v42, 7
  %v44 = vsub.s32 0, %v43
  %v45 = vrot.slane %v40, %v44
  %v46 = vadd.bf16 %v37, %v45
  %v47 = vmul.bf16 %v46, 1009007652
  %v48 = vmax.bf16 %v46, %v47
  %v49 = vsel %vm27, 16843009, 0
  %v50 = vsel %vm28, 16843009, 0
  %v51 = vunpack.c.1.s8 %v49
  %v52 = vunpack.c.0.s8 %v49
  %v53 = vpack.c.b16 %v51, %v52
  %v54 = vunpack.c.1.s8 %v50
  %v55 = vunpack.c.0.s8 %v50
  %v56 = vpack.c.b16 %v54, %v55
  %vm57 = vcmp.ne.s16.totalorder %v53, 0
  %vm58 = vcmp.ne.s16.totalorder %v56, 0
  %v59 = vsel %vm57, 65537, 0
  %v60 = vsel %vm58, 65537, 0
  %v61 = vunpack.c.l.b16 %v59
  %v62 = vunpack.c.l.b16 %v60
  %v63 = vpack.c.b16 %v62, %v61
  %vm64 = vcmp.ne.s16.totalorder %v63, 0
  %v65 = vsel %vm64, %v48, 4048220490
  %vm66 = vcmask 130048
  %v69 = vsel %vm66, %v65, 4286644096
  %v71 = vunpack.i.l.bf16 %v69
  %v72 = vunpack.i.h.bf16 %v69
  %v73 = vmax.f32 %v71, %v72
  %v74 = vrot.slane %v73, 4
  %v75 = vmax.f32 %v73, %v74
  %v76 = vrot.slane %v75, 2
  %v77 = vmax.f32 %v75, %v76
  %v78 = vrot.slane %v77, 1
  %v79 = vmax.f32 %v77, %v78
  %v80 = vpack.i.bf16 %v79, %v79
  %v81 = vsub.bf16 %v65, %v80
  %v83 = vmul.bf16 %v81, 1069105081
  %v84 = vpow.bf16.pop %v83
  %v85 = vunpack.c.l.bf16 %v84
  %v86 = vunpack.c.h.bf16 %v84
  %v87 = vsel %vm66, %v85, 0.0
  %v88 = vsel %vm66, %v86, 0.0
  %v89 = vadd.f32 %v87, %v88
  %v90 = vrot.slane %v89, 4
  %v91 = vadd.f32 %v89, %v90
  %v92 = vrot.slane %v91, 2
  %v93 = vadd.f32 %v91, %v92
  %v94 = vrot.slane %v93, 1
  %v95 = vadd.f32 %v93, %v94
  %v96 = vrcp.pop %v95
  %v97 = vld [vmem:[%s3] sm:$0xf]
  %v99 = vsel %vm66, %v97, 0
  %101 = vmatprep.subr.bf16.mxu0 0
  %102 = vmatpush1.bf16.msra.mxu0 0
  %103 = vmatprep.subr.bf16.mxu0 0
  %104 = vmatpush1.bf16.msra.mxu0 0
  %105 = vmatprep.subr.bf16.mxu0 0
  %106 = vmatpush1.bf16.msra.mxu0 0
  %107 = vmatprep.subr.bf16.mxu0 0
  %108 = vmatpush1.bf16.msra.mxu0 0
  %109 = vmatprep.subr.bf16.mxu0 0
  %110 = vmatpush1.bf16.msra.mxu0 0
  %111 = vmatprep.subr.bf16.mxu0 0
  %112 = vmatpush1.bf16.msra.mxu0 0
  %113 = vmatprep.subr.bf16.mxu0 0
  %114 = vmatpush1.bf16.msra.mxu0 0
  %115 = vmatprep.subr.bf16.mxu0 0
  %116 = vmatpush1.bf16.msra.mxu0 %v84
  %117 = vmatprep.subr.bf16.mxu0 0
  %118 = vmatpush2.bf16.msra.mxu0 0
  %119 = vmatprep.subr.bf16.mxu0 0
  %120 = vmatpush2.bf16.msra.mxu0 0
  %121 = vmatprep.subr.bf16.mxu0 0
  %122 = vmatpush2.bf16.msra.mxu0 0
  %123 = vmatprep.subr.bf16.mxu0 0
  %124 = vmatpush2.bf16.msra.mxu0 0
  %125 = vmatprep.subr.bf16.mxu0 0
  %126 = vmatpush2.bf16.msra.mxu0 0
  %127 = vmatprep.subr.bf16.mxu0 0
  %128 = vmatpush2.bf16.msra.mxu0 0
  %129 = vmatprep.subr.bf16.mxu0 0
  %130 = vmatpush2.bf16.msra.mxu0 0
  %131 = vmatprep.subr.bf16.mxu0 0
  %132 = vmatpush2.bf16.msra.mxu0 0
  %133 = vmatprep.mubr.bf16.mxu0 0
  %134 = vmatmul.mubr.bf16.gmra.mxu0 %v99
  %v135 = vpop.f32.mrf.mxu0
  %v136 = vadd.f32 0.0, %v135
  %v137 = vpop.f32.mrf.mxu0
  %v138 = vpop.f32.mrf.mxu0
  %v139 = vpop.f32.mrf.mxu0
  %140 = vdwg.mxu0
  %v141 = vmul.f32 %v136, %v96
  %142 = vst.msk [vmem:[%s4] sm:$0xff] %vm66, %v141
  %143 = vset.pattern.permute.xlu0 1
  %144 = vperm.xlu0 %143, %v31
  %v145 = vpop.permute.xlu0 %144
  %v147 = vshrl.u32 %v33, 16
  %v148 = vpack.i.b16 %v147, %v147
  %v150 = vlaneseq
  %v151 = vshrl.u32 %v150, 7
  %v152 = vsub.s32 0, %v151
  %v153 = vrot.slane %v148, %v152
  %v154 = vadd.bf16 %v145, %v153
  %v155 = vmul.bf16 %v154, 1009007652
  %v156 = vmax.bf16 %v154, %v155
  %v157 = vsel %vm64, %v156, 4048220490
  %v159 = vsel %vm66, %v157, 4286644096
  %v161 = vunpack.i.l.bf16 %v159
  %v162 = vunpack.i.h.bf16 %v159
  %v163 = vmax.f32 %v161, %v162
  %v164 = vrot.slane %v163, 4
  %v165 = vmax.f32 %v163, %v164
  %v166 = vrot.slane %v165, 2
  %v167 = vmax.f32 %v165, %v166
  %v168 = vrot.slane %v167, 1
  %v169 = vmax.f32 %v167, %v168
  %v170 = vpack.i.bf16 %v169, %v169
  %v171 = vsub.bf16 %v157, %v170
  %v173 = vmul.bf16 %v171, 1069105081
  %v174 = vpow.bf16.pop %v173
  %v175 = vunpack.c.l.bf16 %v174
  %v176 = vunpack.c.h.bf16 %v174
  %v177 = vsel %vm66, %v175, 0.0
  %v178 = vsel %vm66, %v176, 0.0
  %v179 = vadd.f32 %v177, %v178
  %v180 = vrot.slane %v179, 4
  %v181 = vadd.f32 %v179, %v180
  %v182 = vrot.slane %v181, 2
  %v183 = vadd.f32 %v181, %v182
  %v184 = vrot.slane %v183, 1
  %v185 = vadd.f32 %v183, %v184
  %v186 = vrcp.pop %v185
  %s187 = scalar_lea.vmem %s3, 4
  %v188 = vld [vmem:[%s187] sm:$0xf]
  %v190 = vsel %vm66, %v188, 0
  %192 = vmatprep.subr.bf16.mxu0 0
  %193 = vmatpush1.bf16.msra.mxu0 0
  %194 = vmatprep.subr.bf16.mxu0 0
  %195 = vmatpush1.bf16.msra.mxu0 0
  %196 = vmatprep.subr.bf16.mxu0 0
  %197 = vmatpush1.bf16.msra.mxu0 0
  %198 = vmatprep.subr.bf16.mxu0 0
  %199 = vmatpush1.bf16.msra.mxu0 0
  %200 = vmatprep.subr.bf16.mxu0 0
  %201 = vmatpush1.bf16.msra.mxu0 0
  %202 = vmatprep.subr.bf16.mxu0 0
  %203 = vmatpush1.bf16.msra.mxu0 0
  %204 = vmatprep.subr.bf16.mxu0 0
  %205 = vmatpush1.bf16.msra.mxu0 0
  %206 = vmatprep.subr.bf16.mxu0 0
  %207 = vmatpush1.bf16.msra.mxu0 %v174
  %208 = vmatprep.subr.bf16.mxu0 0
  %209 = vmatpush2.bf16.msra.mxu0 0
  %210 = vmatprep.subr.bf16.mxu0 0
  %211 = vmatpush2.bf16.msra.mxu0 0
  %212 = vmatprep.subr.bf16.mxu0 0
  %213 = vmatpush2.bf16.msra.mxu0 0
  %214 = vmatprep.subr.bf16.mxu0 0
  %215 = vmatpush2.bf16.msra.mxu0 0
  %216 = vmatprep.subr.bf16.mxu0 0
  %217 = vmatpush2.bf16.msra.mxu0 0
  %218 = vmatprep.subr.bf16.mxu0 0
  %219 = vmatpush2.bf16.msra.mxu0 0
  %220 = vmatprep.subr.bf16.mxu0 0
  %221 = vmatpush2.bf16.msra.mxu0 0
  %222 = vmatprep.subr.bf16.mxu0 0
  %223 = vmatpush2.bf16.msra.mxu0 0
  %224 = vmatprep.mubr.bf16.mxu0 0
  %225 = vmatmul.mubr.bf16.gmra.mxu0 %v190
  %v226 = vpop.f32.mrf.mxu0
  %v227 = vadd.f32 0.0, %v226
  %v228 = vpop.f32.mrf.mxu0
  %v229 = vpop.f32.mrf.mxu0
  %v230 = vpop.f32.mrf.mxu0
  %231 = vdwg.mxu0
  %v232 = vmul.f32 %v227, %v186
  %233 = vst.msk [vmem:[%s4 + $0x8] sm:$0xff] %vm66, %v232
  %234 = vset.pattern.permute.xlu0 2
  %235 = vperm.xlu0 %234, %v31
  %v236 = vpop.permute.xlu0 %235
  %v238 = vlaneseq
  %v239 = vshrl.u32 %v238, 7
  %v240 = vsub.s32 1, %v239
  %v241 = vrot.slane %v40, %v240
  %v242 = vadd.bf16 %v236, %v241
  %v243 = vmul.bf16 %v242, 1009007652
  %v244 = vmax.bf16 %v242, %v243
  %v245 = vsel %vm64, %v244, 4048220490
  %v247 = vsel %vm66, %v245, 4286644096
  %v249 = vunpack.i.l.bf16 %v247
  %v250 = vunpack.i.h.bf16 %v247
  %v251 = vmax.f32 %v249, %v250
  %v252 = vrot.slane %v251, 4
  %v253 = vmax.f32 %v251, %v252
  %v254 = vrot.slane %v253, 2
  %v255 = vmax.f32 %v253, %v254
  %v256 = vrot.slane %v255, 1
  %v257 = vmax.f32 %v255, %v256
  %v258 = vpack.i.bf16 %v257, %v257
  %v259 = vsub.bf16 %v245, %v258
  %v261 = vmul.bf16 %v259, 1069105081
  %v262 = vpow.bf16.pop %v261
  %v263 = vunpack.c.l.bf16 %v262
  %v264 = vunpack.c.h.bf16 %v262
  %v265 = vsel %vm66, %v263, 0.0
  %v266 = vsel %vm66, %v264, 0.0
  %v267 = vadd.f32 %v265, %v266
  %v268 = vrot.slane %v267, 4
  %v269 = vadd.f32 %v267, %v268
  %v270 = vrot.slane %v269, 2
  %v271 = vadd.f32 %v269, %v270
  %v272 = vrot.slane %v271, 1
  %v273 = vadd.f32 %v271, %v272
  %v274 = vrcp.pop %v273
  %s275 = scalar_lea.vmem %s3, 8
  %v276 = vld [vmem:[%s275] sm:$0xf]
  %v278 = vsel %vm66, %v276, 0
  %280 = vmatprep.subr.bf16.mxu0 0
  %281 = vmatpush1.bf16.msra.mxu0 0
  %282 = vmatprep.subr.bf16.mxu0 0
  %283 = vmatpush1.bf16.msra.mxu0 0
  %284 = vmatprep.subr.bf16.mxu0 0
  %285 = vmatpush1.bf16.msra.mxu0 0
  %286 = vmatprep.subr.bf16.mxu0 0
  %287 = vmatpush1.bf16.msra.mxu0 0
  %288 = vmatprep.subr.bf16.mxu0 0
  %289 = vmatpush1.bf16.msra.mxu0 0
  %290 = vmatprep.subr.bf16.mxu0 0
  %291 = vmatpush1.bf16.msra.mxu0 0
  %292 = vmatprep.subr.bf16.mxu0 0
  %293 = vmatpush1.bf16.msra.mxu0 0
  %294 = vmatprep.subr.bf16.mxu0 0
  %295 = vmatpush1.bf16.msra.mxu0 %v262
  %296 = vmatprep.subr.bf16.mxu0 0
  %297 = vmatpush2.bf16.msra.mxu0 0
  %298 = vmatprep.subr.bf16.mxu0 0
  %299 = vmatpush2.bf16.msra.mxu0 0
  %300 = vmatprep.subr.bf16.mxu0 0
  %301 = vmatpush2.bf16.msra.mxu0 0
  %302 = vmatprep.subr.bf16.mxu0 0
  %303 = vmatpush2.bf16.msra.mxu0 0
  %304 = vmatprep.subr.bf16.mxu0 0
  %305 = vmatpush2.bf16.msra.mxu0 0
  %306 = vmatprep.subr.bf16.mxu0 0
  %307 = vmatpush2.bf16.msra.mxu0 0
  %308 = vmatprep.subr.bf16.mxu0 0
  %309 = vmatpush2.bf16.msra.mxu0 0
  %310 = vmatprep.subr.bf16.mxu0 0
  %311 = vmatpush2.bf16.msra.mxu0 0
  %312 = vmatprep.mubr.bf16.mxu0 0
  %313 = vmatmul.mubr.bf16.gmra.mxu0 %v278
  %v314 = vpop.f32.mrf.mxu0
  %v315 = vadd.f32 0.0, %v314
  %v316 = vpop.f32.mrf.mxu0
  %v317 = vpop.f32.mrf.mxu0
  %v318 = vpop.f32.mrf.mxu0
  %319 = vdwg.mxu0
  %v320 = vmul.f32 %v315, %v274
  %321 = vst.msk [vmem:[%s4 + $0x10] sm:$0xff] %vm66, %v320
  %322 = vset.pattern.permute.xlu0 3
  %323 = vperm.xlu0 %322, %v31
  %v324 = vpop.permute.xlu0 %323
  %v326 = vlaneseq
  %v327 = vshrl.u32 %v326, 7
  %v328 = vsub.s32 1, %v327
  %v329 = vrot.slane %v148, %v328
  %v330 = vadd.bf16 %v324, %v329
  %v331 = vmul.bf16 %v330, 1009007652
  %v332 = vmax.bf16 %v330, %v331
  %v333 = vsel %vm64, %v332, 4048220490
  %v335 = vsel %vm66, %v333, 4286644096
  %v337 = vunpack.i.l.bf16 %v335
  %v338 = vunpack.i.h.bf16 %v335
  %v339 = vmax.f32 %v337, %v338
  %v340 = vrot.slane %v339, 4
  %v341 = vmax.f32 %v339, %v340
  %v342 = vrot.slane %v341, 2
  %v343 = vmax.f32 %v341, %v342
  %v344 = vrot.slane %v343, 1
  %v345 = vmax.f32 %v343, %v344
  %v346 = vpack.i.bf16 %v345, %v345
  %v347 = vsub.bf16 %v333, %v346
  %v349 = vmul.bf16 %v347, 1069105081
  %v350 = vpow.bf16.pop %v349
  %v351 = vunpack.c.l.bf16 %v350
  %v352 = vunpack.c.h.bf16 %v350
  %v353 = vsel %vm66, %v351, 0.0
  %v354 = vsel %vm66, %v352, 0.0
  %v355 = vadd.f32 %v353, %v354
  %v356 = vrot.slane %v355, 4
  %v357 = vadd.f32 %v355, %v356
  %v358 = vrot.slane %v357, 2
  %v359 = vadd.f32 %v357, %v358
  %v360 = vrot.slane %v359, 1
  %v361 = vadd.f32 %v359, %v360
  %v362 = vrcp.pop %v361
  %s363 = scalar_lea.vmem %s3, 12
  %v364 = vld [vmem:[%s363] sm:$0xf]
  %v366 = vsel %vm66, %v364, 0
  %368 = vmatprep.subr.bf16.mxu0 0
  %369 = vmatpush1.bf16.msra.mxu0 0
  %370 = vmatprep.subr.bf16.mxu0 0
  %371 = vmatpush1.bf16.msra.mxu0 0
  %372 = vmatprep.subr.bf16.mxu0 0
  %373 = vmatpush1.bf16.msra.mxu0 0
  %374 = vmatprep.subr.bf16.mxu0 0
  %375 = vmatpush1.bf16.msra.mxu0 0
  %376 = vmatprep.subr.bf16.mxu0 0
  %377 = vmatpush1.bf16.msra.mxu0 0
  %378 = vmatprep.subr.bf16.mxu0 0
  %379 = vmatpush1.bf16.msra.mxu0 0
  %380 = vmatprep.subr.bf16.mxu0 0
  %381 = vmatpush1.bf16.msra.mxu0 0
  %382 = vmatprep.subr.bf16.mxu0 0
  %383 = vmatpush1.bf16.msra.mxu0 %v350
  %384 = vmatprep.subr.bf16.mxu0 0
  %385 = vmatpush2.bf16.msra.mxu0 0
  %386 = vmatprep.subr.bf16.mxu0 0
  %387 = vmatpush2.bf16.msra.mxu0 0
  %388 = vmatprep.subr.bf16.mxu0 0
  %389 = vmatpush2.bf16.msra.mxu0 0
  %390 = vmatprep.subr.bf16.mxu0 0
  %391 = vmatpush2.bf16.msra.mxu0 0
  %392 = vmatprep.subr.bf16.mxu0 0
  %393 = vmatpush2.bf16.msra.mxu0 0
  %394 = vmatprep.subr.bf16.mxu0 0
  %395 = vmatpush2.bf16.msra.mxu0 0
  %396 = vmatprep.subr.bf16.mxu0 0
  %397 = vmatpush2.bf16.msra.mxu0 0
  %398 = vmatprep.subr.bf16.mxu0 0
  %399 = vmatpush2.bf16.msra.mxu0 0
  %400 = vmatprep.mubr.bf16.mxu0 0
  %401 = vmatmul.mubr.bf16.gmra.mxu0 %v366
  %v402 = vpop.f32.mrf.mxu0
  %v403 = vadd.f32 0.0, %v402
  %v404 = vpop.f32.mrf.mxu0
  %v405 = vpop.f32.mrf.mxu0
  %v406 = vpop.f32.mrf.mxu0
  %407 = vdwg.mxu0
  %v408 = vmul.f32 %v403, %v362
  %409 = vst.msk [vmem:[%s4 + $0x18] sm:$0xff] %vm66, %v408
  // Predicated region
  $region18: #{tpu_custom_call.1} parent=0 // pred_check
    _
  $region19: #{tpu_custom_call.1} parent=0 // pred_check_branch
    %411 = sbr.rel (0) target = $region21
  $region20: #{tpu_custom_call.1} parent=0 // pred_region
    _
  $region21: #{tpu_custom_call.1} parent=0 // pred_fallthru
    _
  // Predicated region
  $region22: #{tpu_custom_call.1} parent=0 // pred_check
    _
  $region23: #{tpu_custom_call.1} parent=0 // pred_check_branch
    %413 = sbr.rel (0) target = $region25
  $region24: #{tpu_custom_call.1} parent=0 // pred_region
    _
  $region25: #{tpu_custom_call.1} parent=0 // pred_fallthru
    _

</llo_original>
